<compile_context>
chip_gen: v7x
topology: tpu7x:2x2x1
jax: 0.10.0
libtpu: 0.0.40
codegen_flags: <defaults>
</compile_context>

<pallas_src>
import math

import jax
import jax.numpy as jnp
from jax import lax
from jax.experimental import pallas as pl
from jax.experimental.pallas import tpu as pltpu


def _recon_loss_kernel(lhs_ref, rhs_ref, out_ref, acc_ref):
    """Grid point (i, j):
       lhs_ref : (tm, K)  rows [i*tm, (i+1)*tm) of [img_n | img_o]    (K = 2*D)
       rhs_ref : (tn, K)  rows [j*tn, (j+1)*tn) of [txt_n | -txt_o]
       out_ref : (8, tn)  per-row-tile partial-sum slab (written at last j)
       acc_ref : (8, tn)  f32 VMEM accumulator, resident across the j axis
    """
    j = pl.program_id(1)
    nj = pl.num_programs(1)

    @pl.when(j == 0)
    def _():
        acc_ref[...] = jnp.zeros_like(acc_ref)

    # Single fused MXU matmul over K = 2*D, contracting the last dim of both
    # operands (A @ B.T, no explicit transpose of the txt tile):
    #   [img_n | img_o] @ [txt_n | -txt_o].T == sim_n - sim_o
    dn = (((1,), (1,)), ((), ()))
    diff = lax.dot_general(lhs_ref[...], rhs_ref[...], dn,
                           preferred_element_type=jnp.float32)   # (tm, tn) f32
    sq = diff * diff

    # Sublane-group fold (tm, tn) -> (8, tn): the reshape splits only the
    # second-minor dim by the sublane count (layout-preserving) and the sum over
    # the leading axis lowers to plain VPU vector adds -- no XLU reduce and no
    # loop-carried SMEM scalar dependency.
    tm, tn = sq.shape
    acc_ref[...] += jnp.sum(sq.reshape(tm // 8, 8, tn), axis=0)

    @pl.when(j == nj - 1)
    def _():
        out_ref[...] = acc_ref[...]


def _round_up(x: int, m: int) -> int:
    return -(-x // m) * m


def _default_tiles(b: int) -> tuple[int, int]:
    # tm = img row tile (amortizes the txt re-stream), tn = txt row tile.
    # Keep ni = Bp // tm >= 2 whenever possible so megacore gets work.
    if b <= 256:
        bp = _round_up(b, 16)
        return bp // 2, bp
    if b >= 1024:
        return 512, 256
    return 256, 256


def reconstruction_loss(img_o, txt_o, img_n, txt_n, *, tm=None, tn=None,
                        compute_dtype=jnp.bfloat16):
    B, D = img_o.shape
    assert txt_o.shape == (B, D) and img_n.shape == (B, D) and txt_n.shape == (B, D), \
        "all four embedding tensors must share the (B, D) shape (square sim matrix)"

    tm_d, tn_d = _default_tiles(B)
    tm = tm_d if tm is None else tm
    tn = tn_d if tn is None else tn
    assert tm % 8 == 0 and tn % 8 == 0, "row tiles must be multiples of 8"

    # Fuse the two similarity matmuls into one contraction over K = 2*D.
    lhs = jnp.concatenate([img_n, img_o], axis=-1).astype(compute_dtype)   # (B, 2D)
    rhs = jnp.concatenate([txt_n, -txt_o], axis=-1).astype(compute_dtype)  # (B, 2D)

    # Zero-pad the batch so it tiles cleanly (zero rows contribute 0 to the sum;
    # the divisor below stays the true B*B).
    Bp = _round_up(B, math.lcm(tm, tn))
    if Bp != B:
        pad = Bp - B
        lhs = jnp.pad(lhs, ((0, pad), (0, 0)))
        rhs = jnp.pad(rhs, ((0, pad), (0, 0)))

    K = lhs.shape[1]
    ni, nj = Bp // tm, Bp // tn
    in_item = jnp.dtype(compute_dtype).itemsize

    # Per-grid-step VMEM: double-buffered input blocks + out double buffer +
    # accumulator + f32 intermediates; give the compiler matching headroom.
    step_bytes = 2 * (tm * K + tn * K) * in_item
    step_bytes += 3 * 8 * tn * 4
    step_bytes += 2 * tm * tn * 4
    vmem_limit = int(min(max(2 * step_bytes + (4 << 20), 32 << 20), 64 << 20))

    grid_spec = pltpu.PrefetchScalarGridSpec(
        num_scalar_prefetch=0,
        grid=(ni, nj),
        in_specs=[
            pl.BlockSpec((tm, K), lambda i, j: (i, 0)),   # [img_n | img_o] rows
            pl.BlockSpec((tn, K), lambda i, j: (j, 0)),   # [txt_n | -txt_o] rows
        ],
        out_specs=pl.BlockSpec((8, tn), lambda i, j: (i, 0)),
        scratch_shapes=[pltpu.VMEM((8, tn), jnp.float32)],
    )

    partials = pl.pallas_call(
        _recon_loss_kernel,
        out_shape=jax.ShapeDtypeStruct((ni * 8, tn), jnp.float32),
        grid_spec=grid_spec,
        compiler_params=pltpu.CompilerParams(
            dimension_semantics=("parallel", "arbitrary"),
            vmem_limit_bytes=vmem_limit,
        ),
        cost_estimate=pl.CostEstimate(
            flops=2 * Bp * Bp * K,                  # == 4 * B * B * D (fused)
            transcendentals=0,
            # lhs streamed once; rhs re-streamed for every img row tile.
            bytes_accessed=(Bp * K + ni * Bp * K) * in_item + ni * 8 * tn * 4,
        ),
    )(lhs, rhs)

    # Global mean of (sim_n - sim_o)**2 over the true (B, B) matrix equals the
    # reference ((loss.mean(0) + loss.mean(1)) / 2).mean() because it is square.
    return jnp.sum(partials) / jnp.float32(B * B)


def _reference(img_o, txt_o, img_n, txt_n):
    f32 = jnp.float32
    sim_o = img_o.astype(f32) @ txt_o.astype(f32).T
    sim_n = img_n.astype(f32) @ txt_n.astype(f32).T
    loss = (sim_n - sim_o) ** 2
    per_batch = (loss.mean(axis=0) + loss.mean(axis=1)) / 2.0
    return per_batch.mean()


if __name__ == "__main__":
    def _unit_norm(x):
        return x / jnp.linalg.norm(x, axis=-1, keepdims=True)

    # Case 1: small paired image/text embedding batch (padded 8 -> 16, grid (2, 1)).
    B, D = 8, 128
    k0, k1, k2, k3 = jax.random.split(jax.random.PRNGKey(0), 4)
    img_o = _unit_norm(jax.random.normal(k0, (B, D), dtype=jnp.float32))
    txt_o = _unit_norm(jax.random.normal(k1, (B, D), dtype=jnp.float32))
    img_n = _unit_norm(jax.random.normal(k2, (B, D), dtype=jnp.float32))
    txt_n = _unit_norm(jax.random.normal(k3, (B, D), dtype=jnp.float32))
    ref = _reference(img_o, txt_o, img_n, txt_n)

    # Exact path (f32 operands): validates kernel structure / reductions tightly.
    loss_f32 = reconstruction_loss(img_o, txt_o, img_n, txt_n,
                                   compute_dtype=jnp.float32)
    jax.block_until_ready(loss_f32)
    assert jnp.allclose(loss_f32, ref, rtol=1e-5, atol=1e-7), (loss_f32, ref)

    # Default fast path (bf16 MXU operands, f32 accumulation): relaxed tolerance.
    loss_bf16 = reconstruction_loss(img_o, txt_o, img_n, txt_n)
    jax.block_until_ready(loss_bf16)
    assert jnp.allclose(loss_bf16, ref, rtol=5e-2, atol=1e-4), (loss_bf16, ref)

    # Case 2: multi-tile grid with a non-divisible batch (pad 300 -> 512,
    # grid (2, 2)) and a non-128-multiple embedding dim (full-K blocks).
    B2, D2 = 300, 192
    j0, j1, j2, j3 = jax.random.split(jax.random.PRNGKey(1), 4)
    a_o = _unit_norm(jax.random.normal(j0, (B2, D2), dtype=jnp.float32))
    b_o = _unit_norm(jax.random.normal(j1, (B2, D2), dtype=jnp.float32))
    a_n = _unit_norm(jax.random.normal(j2, (B2, D2), dtype=jnp.float32))
    b_n = _unit_norm(jax.random.normal(j3, (B2, D2), dtype=jnp.float32))
    ref2 = _reference(a_o, b_o, a_n, b_n)

    loss2_f32 = reconstruction_loss(a_o, b_o, a_n, b_n, compute_dtype=jnp.float32)
    jax.block_until_ready(loss2_f32)
    assert jnp.allclose(loss2_f32, ref2, rtol=1e-4, atol=1e-7), (loss2_f32, ref2)

    loss2_bf16 = reconstruction_loss(a_o, b_o, a_n, b_n)
    jax.block_until_ready(loss2_bf16)
    assert jnp.allclose(loss2_bf16, ref2, rtol=5e-2, atol=1e-4), (loss2_bf16, ref2)

    print("KERNEL_OK")
</pallas_src>

<mosaic_0001>
module attributes {stable_mosaic.version = 11 : i64} {
  func.func @_recon_loss_kernel(%arg0: i32, %arg1: i32, %arg2: memref<8x256xf32, #tpu.memory_space<vmem>>, %arg3: memref<16x256xf32, #tpu.memory_space<vmem>>, %arg4: memref<8x16xf32, #tpu.memory_space<vmem>>, %arg5: memref<8x16xf32, #tpu.memory_space<vmem>>) attributes {dimension_semantics = [#tpu.dimension_semantics<parallel>, #tpu.dimension_semantics<arbitrary>], iteration_bounds = array<i64: 2, 1>, scalar_prefetch = 0 : i64, scratch_operands = 1 : i64, tpu.core_type = #tpu.core_type<tc>, window_params = [{transform_indices = @transform_0, window_bounds = array<i64: 8, 256>}, {transform_indices = @transform_1, window_bounds = array<i64: 16, 256>}, {transform_indices = @transform_2, window_bounds = array<i64: 8, 16>}]} {
    %c0_i32 = arith.constant 0 : i32
    %0 = arith.cmpi eq, %arg1, %c0_i32 : i32
    %1 = arith.extui %0 : i1 to i32
    %c0_i32_0 = arith.constant 0 : i32
    %2 = arith.cmpi ne, %1, %c0_i32_0 : i32
    scf.if %2 {
      %cst_11 = arith.constant 0.000000e+00 : f32
      %15 = vector.broadcast %cst_11 : f32 to vector<8x16xf32>
      %c0_12 = arith.constant 0 : index
      %c0_13 = arith.constant 0 : index
      %16 = vector.load %arg5[%c0_12, %c0_13] : memref<8x16xf32, #tpu.memory_space<vmem>>, vector<8x16xf32>
      tpu.vector_store %arg5[%c0_12, %c0_13], %15 {strides = array<i32>} : memref<8x16xf32, #tpu.memory_space<vmem>>, vector<8x16xf32>,
    } else {
    }
    %c0 = arith.constant 0 : index
    %c0_1 = arith.constant 0 : index
    %3 = vector.load %arg2[%c0, %c0_1] : memref<8x256xf32, #tpu.memory_space<vmem>>, vector<8x256xf32>
    %c0_2 = arith.constant 0 : index
    %c0_3 = arith.constant 0 : index
    %4 = vector.load %arg3[%c0_2, %c0_3] : memref<16x256xf32, #tpu.memory_space<vmem>>, vector<16x256xf32>
    %cst = arith.constant dense<0.000000e+00> : vector<8x16xf32>
    %5 = tpu.matmul %3, %4, %cst {dimension_numbers = #tpu.dot_dimension_numbers<[1], [1], [0], [0], [0, 0, 1, 0], [], []>} : vector<8x256xf32>, vector<16x256xf32>, vector<8x16xf32> -> vector<8x16xf32>
    %6 = arith.mulf %5, %5 : vector<8x16xf32>
    %c0_4 = arith.constant 0 : index
    %c0_5 = arith.constant 0 : index
    %7 = vector.load %arg5[%c0_4, %c0_5] : memref<8x16xf32, #tpu.memory_space<vmem>>, vector<8x16xf32>
    %8 = vector.shape_cast %6 : vector<8x16xf32> to vector<1x8x16xf32>
    %cst_6 = arith.constant dense<0.000000e+00> : vector<8x16xf32>
    %9 = vector.multi_reduction <add>, %8, %cst_6 [0] : vector<1x8x16xf32> to vector<8x16xf32>
    %10 = arith.addf %7, %9 : vector<8x16xf32>
    %c0_7 = arith.constant 0 : index
    %c0_8 = arith.constant 0 : index
    %11 = vector.load %arg5[%c0_7, %c0_8] : memref<8x16xf32, #tpu.memory_space<vmem>>, vector<8x16xf32>
    tpu.vector_store %arg5[%c0_7, %c0_8], %10 {strides = array<i32>} : memref<8x16xf32, #tpu.memory_space<vmem>>, vector<8x16xf32>,
    %c0_i32_9 = arith.constant 0 : i32
    %12 = arith.cmpi eq, %arg1, %c0_i32_9 : i32
    %13 = arith.extui %12 : i1 to i32
    %c0_i32_10 = arith.constant 0 : i32
    %14 = arith.cmpi ne, %13, %c0_i32_10 : i32
    scf.if %14 {
      %c0_11 = arith.constant 0 : index
      %c0_12 = arith.constant 0 : index
      %15 = vector.load %arg5[%c0_11, %c0_12] : memref<8x16xf32, #tpu.memory_space<vmem>>, vector<8x16xf32>
      %c0_13 = arith.constant 0 : index
      %c0_14 = arith.constant 0 : index
      %16 = vector.load %arg4[%c0_13, %c0_14] : memref<8x16xf32, #tpu.memory_space<vmem>>, vector<8x16xf32>
      tpu.vector_store %arg4[%c0_13, %c0_14], %15 {strides = array<i32>} : memref<8x16xf32, #tpu.memory_space<vmem>>, vector<8x16xf32>,
    } else {
    }
    return
  }
  func.func @transform_0(%arg0: i32, %arg1: i32) -> (i32, i32) {
    %c0_i32 = arith.constant 0 : i32
    %c0_i32_0 = arith.constant 0 : i32
    return %arg0, %c0_i32 : i32, i32
  }
  func.func @transform_1(%arg0: i32, %arg1: i32) -> (i32, i32) {
    %c0_i32 = arith.constant 0 : i32
    %c0_i32_0 = arith.constant 0 : i32
    return %arg1, %c0_i32 : i32, i32
  }
  func.func @transform_2(%arg0: i32, %arg1: i32) -> (i32, i32) {
    %c0_i32 = arith.constant 0 : i32
    %c0_i32_0 = arith.constant 0 : i32
    return %arg0, %c0_i32 : i32, i32
  }
}

</mosaic_0001>

<llo_original>
// kernel: tpu_custom_call.1
$region0: #{tpu_custom_call.1}
  #allocation0 [shape = 'u32[]', space=smem, size = 0x4, offset = 0x4, fixed_abs, tag = 'smem constant byte address 0x4 - core index']
  #allocation1 [shape = 'u32[144,128]{1,0:T(1,128)}', space=vmem, size = 0x12000, scoped, tag = 'internal scratch']
  #allocation2 [shape = 'f32[8,16]{1,0:T(8,128)}', space=vmem, size = 0x1000, scoped, tag = 'scratch operand']
  %s0 = inlined_call_operand.hbm [shape: f32[16,256], index: 0, kind: input, shape index: {}]
  %s1 = inlined_call_operand.hbm [shape: f32[16,256], index: 1, kind: input, shape index: {}]
  %s2 = inlined_call_operand.hbm [shape: f32[16,16], index: 2, kind: output, shape index: {}]
  %s3 = sld [smem:[#allocation0]]
  $region57: #{tpu_custom_call.1} parent=0
    _
  %s5 = ssub.s32 1, %s3
  %s6 = scalar_select 0, %s5, %s3
  $region1: #{tpu_custom_call.1} parent=0
    #allocation3 [shape = 'u8[16384]{0}', space=vmem, size = 0x4000, scoped, tag = 'input window, operand 0']
    #allocation4 [shape = 's32[2]{0}', space=sflag, size = 0x8, scoped, tag = 'scoped memory for tpu_custom_call.1']
    #allocation5 [shape = 's32[2]{0}', space=sflag, size = 0x8, scoped, tag = 'scoped memory for tpu_custom_call.1']
    #allocation6 [shape = 'u8[16384]{0}', space=vmem, size = 0x4000, scoped, tag = 'input window, operand 1, single buffered']
    #allocation7 [shape = 's32[1]{0}', space=sflag, size = 0x4, scoped, tag = 'scoped memory for tpu_custom_call.1']
    #allocation8 [shape = 'u8[8192]{0}', space=vmem, size = 0x2000, scoped, tag = 'output window, operand 0']
    %7 = vsyncpa [#allocation4], 0
    %s8 = scalar_lea.sflag [#allocation4], 1
    %9 = vsyncpa %s8, 0
    %10 = vsyncpa [#allocation7], 0
    %11 = vsyncpa [#allocation5], 0
    %s12 = scalar_lea.sflag [#allocation5], 1
    %13 = vsyncpa %s12, 0
    loop: start=0, step=1, limit=4
    $region2: #{tpu_custom_call.1} parent=1 // loop_pre_header
      _
    $region3: #{tpu_custom_call.1} parent=1 // loop_header
      %s15 = sphi 0, %s19
      %p16 = scmp.ge.s32.totalorder %s15, 4
      %s22 = sphi 0, %s34
      %s23 = sphi 0, %s30
      %s24 = sphi 0, %s22
      %s25 = sphi 0, %s23
      %s26 = sphi 0, %s24
      %s27 = sphi 0, %s25
      %s37 = sphi 0, %s39
      %s40 = sphi 0, %s37
      %s41 = sphi 0, %s40
      %s57 = sphi 0, %s41
      %s63 = sphi 0, %s65
      %s66 = sphi 0, %s63
      %s67 = sphi 0, %s66
      %s83 = sphi 0, %s67
      %s89 = sphi 0, %s91
      %s92 = sphi 0, %s89
      %s93 = sphi 0, %s92
      %s109 = sphi 0, %s93
    $region4: #{tpu_custom_call.1} parent=1 // loop_header_branch
      %18 = sbr.rel (%p16) target = $region8
    $region5: #{tpu_custom_call.1} parent=1 // loop_body
      %s20 = ssub.s32 %s15, 1
      %s21 = ssub.s32 %s15, 2
      %s28 = sadd.s32 1, %s23
      %p29 = scmp.ge.s32.totalorder %s28, 1
      %s30 = scalar_select %p29, 0, %s28
      %s31 = sadd.s32 1, %s22
      %s32 = scalar_select %p29, %s31, %s22
      %p33 = scmp.ge.s32.totalorder %s32, 2
      %s34 = scalar_select %p33, 0, %s32
      %s35 = ssub.s32 %s22, %s34
      %p36 = scmp.eq.s32.totalorder %s35, 0
      %s38 = sadd.s32 %s37, 1
      %s39 = scalar_select %p36, %s37, %s38
      %p42 = pneg %p36
      %p43 = scmp.eq.s32.totalorder %s15, 1
      %p44 = por %p42, %p43
      %p45 = scmp.ne.s32.totalorder %s37, %s40
      %p46 = scmp.eq.s32.totalorder %s15, 0
      %p47 = por %p45, %p46
      %p48 = scmp.ne.s32.totalorder %s37, %s40
      %p49 = scmp.eq.s32.totalorder %s20, 1
      %p50 = por %p48, %p49
      %p51 = scmp.ne.s32.totalorder %s40, %s41
      %p52 = scmp.eq.s32.totalorder %s20, 0
      %p53 = por %p51, %p52
      %p54 = scmp.ne.s32.totalorder %s40, %s41
      %p55 = scmp.eq.s32.totalorder %s21, 1
      %p56 = por %p54, %p55
      %p58 = scmp.ne.s32.totalorder %s41, %s57
      %p59 = scmp.eq.s32.totalorder %s21, 0
      %p60 = por %p58, %p59
      %s61 = ssub.s32 %s23, %s30
      %p62 = scmp.eq.s32.totalorder %s61, 0
      %s64 = sadd.s32 %s63, 1
      %s65 = scalar_select %p62, %s63, %s64
      %p68 = pneg %p62
      %p69 = scmp.eq.s32.totalorder %s15, 1
      %p70 = por %p68, %p69
      %p71 = scmp.ne.s32.totalorder %s63, %s66
      %p72 = scmp.eq.s32.totalorder %s15, 0
      %p73 = por %p71, %p72
      %p74 = scmp.ne.s32.totalorder %s63, %s66
      %p75 = scmp.eq.s32.totalorder %s20, 1
      %p76 = por %p74, %p75
      %p77 = scmp.ne.s32.totalorder %s66, %s67
      %p78 = scmp.eq.s32.totalorder %s20, 0
      %p79 = por %p77, %p78
      %p80 = scmp.ne.s32.totalorder %s66, %s67
      %p81 = scmp.eq.s32.totalorder %s21, 1
      %p82 = por %p80, %p81
      %p84 = scmp.ne.s32.totalorder %s67, %s83
      %p85 = scmp.eq.s32.totalorder %s21, 0
      %p86 = por %p84, %p85
      %s87 = ssub.s32 %s22, %s34
      %p88 = scmp.eq.s32.totalorder %s87, 0
      %s90 = sadd.s32 %s89, 1
      %s91 = scalar_select %p88, %s89, %s90
      %p94 = pneg %p88
      %p95 = scmp.eq.s32.totalorder %s15, 1
      %p96 = por %p94, %p95
      %p97 = scmp.ne.s32.totalorder %s89, %s92
      %p98 = scmp.eq.s32.totalorder %s15, 0
      %p99 = por %p97, %p98
      %p100 = scmp.ne.s32.totalorder %s89, %s92
      %p101 = scmp.eq.s32.totalorder %s20, 1
      %p102 = por %p100, %p101
      %p103 = scmp.ne.s32.totalorder %s92, %s93
      %p104 = scmp.eq.s32.totalorder %s20, 0
      %p105 = por %p103, %p104
      %p106 = scmp.ne.s32.totalorder %s92, %s93
      %p107 = scmp.eq.s32.totalorder %s21, 1
      %p108 = por %p106, %p107
      %p110 = scmp.ne.s32.totalorder %s93, %s109
      %p111 = scmp.eq.s32.totalorder %s21, 0
      %p112 = por %p110, %p111
      %p113 = scmp.le.s32.totalorder 1, %s15
      %p114 = scmp.lt.s32.totalorder %s15, 3
      %p115 = pnand %p113, %p114
      %p116 = pneg %p115
      // Predicated region
      $region9: #{tpu_custom_call.1} parent=5 // pred_check
        _
      $region10: #{tpu_custom_call.1} parent=5 // pred_check_branch
        %118 = sbr.rel (%p115) target = $region12
      $region11: #{tpu_custom_call.1} parent=5 // pred_region
        %s119 = ssub.s32 %s15, 1
        // Predicated region
        $region13: #{tpu_custom_call.1} parent=11 // pred_check
          %p120 = pneg %p79
        $region14: #{tpu_custom_call.1} parent=11 // pred_check_branch
          %122 = sbr.rel (%p120) target = $region16
        $region15: #{tpu_custom_call.1} parent=11 // pred_region
          %s123 = smul.u32 2, %s25
          %s125 = ssub.s32 512, 512
          %126 = vsyncadd [#allocation7], %s125
          %s127 = smul.addr %s123, 2
          %s128 = smul.addr %s127, 128
          %s129 = scalar_lea.hbm %s1, %s128
          %s130 = sshll.u32 [#allocation6], 4
          %s131 = int_to_ptr.vmem [resolvable:$true] %s130
          %136 = dma.hbm_to_vmem [thread:$0]  %s129, 512, %s131, [#allocation7], 256, 256, 16
        $region16: #{tpu_custom_call.1} parent=11 // pred_fallthru
          _
      $region12: #{tpu_custom_call.1} parent=5 // pred_fallthru
        _
      %p137 = scmp.lt.s32.totalorder %s15, 2
      // Predicated region
      $region17: #{tpu_custom_call.1} parent=5 // pred_check
        %p138 = pneg %p137
      $region18: #{tpu_custom_call.1} parent=5 // pred_check_branch
        %140 = sbr.rel (%p138) target = $region20
      $region19: #{tpu_custom_call.1} parent=5 // pred_region
        // Predicated region
        $region21: #{tpu_custom_call.1} parent=19 // pred_check
          %p141 = pneg %p47
        $region22: #{tpu_custom_call.1} parent=19 // pred_check_branch
          %143 = sbr.rel (%p141) target = $region24
        $region23: #{tpu_custom_call.1} parent=19 // pred_region
          %s144 = sand.u32 %s37, 1
          %s145 = scalar_lea.sflag [#allocation4], %s144
          %s146 = sand.u32 %s37, 1
          %s147 = smul.addr %s146, 16
          %s148 = scalar_lea.vmem [#allocation3], %s147
          %s150 = ssub.s32 256, 256
          %151 = vsyncadd %s145, %s150
          %s152 = smul.addr %s22, 2
          %s153 = smul.addr %s152, 128
          %s154 = scalar_lea.hbm %s0, %s153
          %s156 = sshll.u32 %s148, 4
          %s157 = int_to_ptr.vmem [resolvable:$true] %s156
          %159 = dma.hbm_to_vmem [thread:$0]  %s154, 256, %s157, %s145
        $region24: #{tpu_custom_call.1} parent=19 // pred_fallthru
          _
      $region20: #{tpu_custom_call.1} parent=5 // pred_fallthru
        _
      %p160 = scmp.le.s32.totalorder 1, %s15
      %p161 = scmp.lt.s32.totalorder %s15, 3
      %p162 = pnand %p160, %p161
      %p163 = pneg %p162
      // Predicated region
      $region25: #{tpu_custom_call.1} parent=5 // pred_check
        _
      $region26: #{tpu_custom_call.1} parent=5 // pred_check_branch
        %165 = sbr.rel (%p162) target = $region28
      $region27: #{tpu_custom_call.1} parent=5 // pred_region
        %s166 = ssub.s32 %s15, 1
        %s167 = sand.u32 %s40, 1
        %s168 = scalar_lea.sflag [#allocation4], %s167
        %s169 = sand.u32 %s40, 1
        %s170 = smul.addr %s169, 16
        %s171 = scalar_lea.vmem [#allocation3], %s170
        // Predicated region
        $region29: #{tpu_custom_call.1} parent=27 // pred_check
          %p172 = pneg %p53
        $region30: #{tpu_custom_call.1} parent=27 // pred_check_branch
          %174 = sbr.rel (%p172) target = $region32
        $region31: #{tpu_custom_call.1} parent=27 // pred_region
          %175 = dma.done %s168, 256
        $region32: #{tpu_custom_call.1} parent=27 // pred_fallthru
          _
        // Predicated region
        $region33: #{tpu_custom_call.1} parent=27 // pred_check
          %p176 = pneg %p79
        $region34: #{tpu_custom_call.1} parent=27 // pred_check_branch
          %178 = sbr.rel (%p176) target = $region36
        $region35: #{tpu_custom_call.1} parent=27 // pred_region
          %179 = dma.done [#allocation7], 512
        $region36: #{tpu_custom_call.1} parent=27 // pred_fallthru
          _
        %s180 = sand.u32 %s40, 1
        %s181 = scalar_lea.sflag [#allocation4], %s180
        %s182 = sand.u32 %s40, 1
        %s183 = smul.addr %s182, 16
        %s184 = scalar_lea.vmem [#allocation3], %s183
        %p185 = pneg %p53
        %p186 = pneg %p50
        %p187 = pneg %p79
        %p188 = pneg %p76
        %p189 = pneg %p105
        %p190 = pneg %p102
        %s191 = sand.u32 %s92, 1
        %s192 = scalar_lea.sflag [#allocation5], %s191
        %s193 = sand.u32 %s92, 1
        %s194 = smul.addr %s193, 8
        %s195 = scalar_lea.vmem [#allocation8], %s194
        %s196 = smul.u32 2, %s25
        %p197 = scmp.eq.s32.totalorder %s25, 0
        // Predicated region
        $region37: #{tpu_custom_call.1} parent=27 // pred_check
          %p198 = pneg %p197
        $region38: #{tpu_custom_call.1} parent=27 // pred_check_branch
          %200 = sbr.rel (%p198) target = $region40
        $region39: #{tpu_custom_call.1} parent=27 // pred_region
          %vm201 = vcmask 130048
          %202 = vst.msk [vmem:[#allocation2] sm:$0xff] %vm201, 0.0
        $region40: #{tpu_custom_call.1} parent=27 // pred_fallthru
          _
        %v203 = vld [vmem:[%s171] sm:$0xff]
        %v204 = vld [vmem:[%s171 + $0x8] sm:$0xff]
        %v205 = vld [vmem:[#allocation6] sm:$0xff]
        %v206 = vld [vmem:[#allocation6 + $0x8] sm:$0xff]
        %v207 = vld [vmem:[#allocation6 + $0x10] sm:$0xff]
        %v208 = vld [vmem:[#allocation6 + $0x18] sm:$0xff]
        %209 = vmatprep.subr.mxu0 %v206
        %210 = vmatpush1.xpose.msra.mxu0 %v205
        %211 = vmatprep.subr.mxu0 %v208
        %212 = vmatpush1.xpose.msra.mxu0 %v207
        %213 = vmatprep.subr.mxu0 0.0
        %214 = vmatpush1.xpose.msra.mxu0 0.0
        %215 = vmatprep.subr.mxu0 0.0
        %216 = vmatpush1.xpose.msra.mxu0 0.0
        %217 = vmatprep.subr.mxu0 0.0
        %218 = vmatpush1.xpose.msra.mxu0 0.0
        %219 = vmatprep.subr.mxu0 0.0
        %220 = vmatpush1.xpose.msra.mxu0 0.0
        %221 = vmatprep.subr.mxu0 0.0
        %222 = vmatpush1.xpose.msra.mxu0 0.0
        %223 = vmatprep.subr.mxu0 0.0
        %224 = vmatpush1.xpose.msra.mxu0 0.0
        %225 = vmatprep.subr.mxu0 0.0
        %226 = vmatpush1.xpose.msra.mxu0 0.0
        %227 = vmatprep.subr.mxu0 0.0
        %228 = vmatpush1.xpose.msra.mxu0 0.0
        %229 = vmatprep.subr.mxu0 0.0
        %230 = vmatpush1.xpose.msra.mxu0 0.0
        %231 = vmatprep.subr.mxu0 0.0
        %232 = vmatpush1.xpose.msra.mxu0 0.0
        %233 = vmatprep.subr.mxu0 0.0
        %234 = vmatpush1.xpose.msra.mxu0 0.0
        %235 = vmatprep.subr.mxu0 0.0
        %236 = vmatpush1.xpose.msra.mxu0 0.0
        %237 = vmatprep.subr.mxu0 0.0
        %238 = vmatpush1.xpose.msra.mxu0 0.0
        %239 = vmatprep.subr.mxu0 0.0
        %240 = vmatpush1.xpose.msra.mxu0 0.0
        %241 = vmatprep.subr.mxu0 0.0
        %242 = vmatpush1.xpose.msra.mxu0 0.0
        %243 = vmatprep.subr.mxu0 0.0
        %244 = vmatpush1.xpose.msra.mxu0 0.0
        %245 = vmatprep.subr.mxu0 0.0
        %246 = vmatpush1.xpose.msra.mxu0 0.0
        %247 = vmatprep.subr.mxu0 0.0
        %248 = vmatpush1.xpose.msra.mxu0 0.0
        %249 = vmatprep.subr.mxu0 0.0
        %250 = vmatpush1.xpose.msra.mxu0 0.0
        %251 = vmatprep.subr.mxu0 0.0
        %252 = vmatpush1.xpose.msra.mxu0 0.0
        %253 = vmatprep.subr.mxu0 0.0
        %254 = vmatpush1.xpose.msra.mxu0 0.0
        %255 = vmatprep.subr.mxu0 0.0
        %256 = vmatpush1.xpose.msra.mxu0 0.0
        %257 = vmatprep.subr.mxu0 0.0
        %258 = vmatpush1.xpose.msra.mxu0 0.0
        %259 = vmatprep.subr.mxu0 0.0
        %260 = vmatpush1.xpose.msra.mxu0 0.0
        %261 = vmatprep.subr.mxu0 0.0
        %262 = vmatpush1.xpose.msra.mxu0 0.0
        %263 = vmatprep.subr.mxu0 0.0
        %264 = vmatpush1.xpose.msra.mxu0 0.0
        %265 = vmatprep.subr.mxu0 0.0
        %266 = vmatpush1.xpose.msra.mxu0 0.0
        %267 = vmatprep.subr.mxu0 0.0
        %268 = vmatpush1.xpose.msra.mxu0 0.0
        %269 = vmatprep.subr.mxu0 0.0
        %270 = vmatpush1.xpose.msra.mxu0 0.0
        %271 = vmatprep.subr.mxu0 0.0
        %272 = vmatpush1.xpose.msra.mxu0 0.0
        %273 = vmatprep.mubr.f32.mxu0 %v204
        %274 = vmatmul.mubr.f32.gmra.mrb[0].mxu0 %v203
        %v275 = vpop.f32.mrb[0].mxu0
        %v276 = vadd.f32 0.0, %v275
        %v277 = vpop.f32.mrb[0].mxu0
        %278 = vdwg.mxu0
        %v279 = vmul.f32 %v276, %v276
        %v280 = vld [vmem:[#allocation2] sm:$0xff]
        %v281 = vadd.f32 %v279, 0.0
        %v282 = vadd.f32 %v280, %v281
        %vm283 = vcmask 130048
        %284 = vst.msk [vmem:[#allocation2] sm:$0xff] %vm283, %v282
        // Predicated region
        $region41: #{tpu_custom_call.1} parent=27 // pred_check
          %p285 = pneg %p197
        $region42: #{tpu_custom_call.1} parent=27 // pred_check_branch
          %287 = sbr.rel (%p285) target = $region44
        $region43: #{tpu_custom_call.1} parent=27 // pred_region
          %v288 = vld [vmem:[#allocation2] sm:$0xff]
          %289 = vst.msk [vmem:[%s195] sm:$0xff] %vm283, %v288
        $region44: #{tpu_custom_call.1} parent=27 // pred_fallthru
          _
        %s290 = sand.u32 %s92, 1
        %s291 = scalar_lea.sflag [#allocation5], %s290
        %s292 = sand.u32 %s92, 1
        %s293 = smul.addr %s292, 8
        %s294 = scalar_lea.vmem [#allocation8], %s293
        // Predicated region
        $region45: #{tpu_custom_call.1} parent=27 // pred_check
          %p295 = pneg %p102
        $region46: #{tpu_custom_call.1} parent=27 // pred_check_branch
          %297 = sbr.rel (%p295) target = $region48
        $region47: #{tpu_custom_call.1} parent=27 // pred_region
          %s299 = ssub.s32 128, 128
          %300 = vsyncadd %s291, %s299
          %s301 = smul.addr %s24, 128
          %s302 = scalar_lea.hbm %s2, %s301
          %s304 = sshll.u32 %s294, 4
          %s305 = int_to_ptr.vmem [resolvable:$true] %s304
          %307 = dma.vmem_to_hbm [thread:$0]  %s305, 128, %s302, %s291
        $region48: #{tpu_custom_call.1} parent=27 // pred_fallthru
          _
      $region28: #{tpu_custom_call.1} parent=5 // pred_fallthru
        _
      %p308 = scmp.le.s32.totalorder 2, %s15
      // Predicated region
      $region49: #{tpu_custom_call.1} parent=5 // pred_check
        %p309 = pneg %p308
      $region50: #{tpu_custom_call.1} parent=5 // pred_check_branch
        %311 = sbr.rel (%p309) target = $region52
      $region51: #{tpu_custom_call.1} parent=5 // pred_region
        %s312 = ssub.s32 %s15, 2
        // Predicated region
        $region53: #{tpu_custom_call.1} parent=51 // pred_check
          %p313 = pneg %p108
        $region54: #{tpu_custom_call.1} parent=51 // pred_check_branch
          %315 = sbr.rel (%p313) target = $region56
        $region55: #{tpu_custom_call.1} parent=51 // pred_region
          %s316 = sand.u32 %s93, 1
          %s317 = scalar_lea.sflag [#allocation5], %s316
          %s318 = sand.u32 %s93, 1
          %s319 = smul.addr %s318, 8
          %s320 = scalar_lea.vmem [#allocation8], %s319
          %321 = dma.done %s317, 128
        $region56: #{tpu_custom_call.1} parent=51 // pred_fallthru
          _
      $region52: #{tpu_custom_call.1} parent=5 // pred_fallthru
        _
    $region6: #{tpu_custom_call.1} parent=1 // loop_footer
      %s19 = sadd.s32 1, %s15
    $region7: #{tpu_custom_call.1} parent=1 // loop_footer_branch
      %14 = sbr.rel target = $region3
    $region8: #{tpu_custom_call.1} parent=1 // loop_exit
      _
    %322 = vsyncpa [#allocation4], 1
    %s323 = scalar_lea.sflag [#allocation4], 1
    %324 = vsyncpa %s323, 1
    %325 = vsyncpa [#allocation7], 1
    %326 = vsyncpa [#allocation5], 1
    %s327 = scalar_lea.sflag [#allocation5], 1
    %328 = vsyncpa %s327, 1

</llo_original>
